<compile_context>
chip_gen: v7x
topology: tpu7x:2x2x1
jax: 0.10.0
libtpu: 0.0.40
codegen_flags: <defaults>
</compile_context>

<pallas_src>
import functools

import jax
import jax.numpy as jnp
from jax import lax
from jax.experimental import pallas as pl
from jax.experimental.pallas import tpu as pltpu


def _pos_proj_kernel(x_ref, pos_ref, wblk_ref, wpos_ref, o_ref):
    # x_ref   : (B*C, tq)   channels-per-batch rows, hw tile in lanes
    # pos_ref : (3,   tq)   rows = [xx, yy, 1]
    # wblk_ref: (B*C, B*F)  block-diagonal projection weight (w_feat per batch)
    # wpos_ref: (3,   B*F)  rows = [w_x, w_y, bias] tiled across batches
    # o_ref   : (tq,  B*F)  output slab (b*F + f columns)
    acc = lax.dot_general(
        x_ref[...], wblk_ref[...],
        dimension_numbers=(((0,), (0,)), ((), ())),
        preferred_element_type=jnp.float32)
    acc = acc + lax.dot_general(
        pos_ref[...], wpos_ref[...],
        dimension_numbers=(((0,), (0,)), ((), ())),
        preferred_element_type=jnp.float32)
    o_ref[...] = acc.astype(o_ref.dtype)


def _pick_tile(hw, row_bytes, budget=8 << 20):
    # Largest hw-tile that (a) divides H*W, (b) fits the VMEM budget, and
    # (c) leaves >=2 grid steps when possible (so v7x megacore can shard).
    cands = [t for t in (2048, 1024, 512, 256, 128)
             if hw % t == 0 and t * row_bytes <= budget]
    for t in cands:
        if hw // t >= 2:
            return t
    if cands:
        return cands[0]
    # Fallback: single full-extent block (correct; only hit for small / odd H*W).
    return hw


def positional_encoding_forward(x_nchw, weight, bias):
    """x_nchw: (B, C, H, W); weight: (F, C+2); bias: (F,) -> (H*W, B, F)."""
    B, C, H, W = x_nchw.shape
    F = weight.shape[0]
    assert weight.shape == (F, C + 2) and bias.shape == (F,)
    HW = H * W
    BC, BF = B * C, B * F

    # ---- free reshape of the input (no data movement) ----
    x2d = x_nchw.reshape(BC, HW)

    # ---- tiny constant operands (built once, resident in VMEM) ----
    w_feat_t = weight[:, :C].T.astype(jnp.float32)            # (C, F)
    w_blk = jnp.kron(jnp.eye(B, dtype=jnp.float32), w_feat_t)  # (B*C, B*F)

    w_x = weight[:, C].astype(jnp.float32)                     # (F,)
    w_y = weight[:, C + 1].astype(jnp.float32)                 # (F,)
    w_pos = jnp.stack([jnp.tile(w_x, B),
                       jnp.tile(w_y, B),
                       jnp.tile(bias.astype(jnp.float32), B)], axis=0)  # (3, B*F)

    # Positional rows (torch.linspace(-1,1,1) == [-1]; jnp.linspace matches).
    xl = jnp.linspace(-1.0, 1.0, H, dtype=jnp.float32)
    yl = jnp.linspace(-1.0, 1.0, W, dtype=jnp.float32)
    pos = jnp.stack([jnp.repeat(xl, W),                 # xx[hw] = xl[hw // W]
                     jnp.tile(yl, H),                   # yy[hw] = yl[hw %  W]
                     jnp.ones((HW,), jnp.float32)], axis=0)     # (3, HW)

    # ---- tiling ----
    row_bytes = 4 * (BC + 3 + BF) * 2                   # in + out, double-buffered
    tq = _pick_tile(HW, row_bytes)
    grid = (HW // tq,)

    cost = pl.CostEstimate(
        flops=2 * HW * (BC + 3) * BF,
        transcendentals=0,
        bytes_accessed=4 * (BC * HW + 3 * HW + HW * BF + BC * BF + 3 * BF))

    out2d = pl.pallas_call(
        _pos_proj_kernel,
        out_shape=jax.ShapeDtypeStruct((HW, BF), x_nchw.dtype),
        grid=grid,
        in_specs=[
            pl.BlockSpec((BC, tq), lambda m: (0, m)),    # x rows (lane-dense)
            pl.BlockSpec((3, tq), lambda m: (0, m)),     # positional rows
            pl.BlockSpec((BC, BF), lambda m: (0, 0)),    # block-diag weight (resident)
            pl.BlockSpec((3, BF), lambda m: (0, 0)),     # pos weight + bias (resident)
        ],
        out_specs=pl.BlockSpec((tq, BF), lambda m: (m, 0)),
        compiler_params=pltpu.CompilerParams(
            dimension_semantics=("parallel",)),
        cost_estimate=cost,
    )(x2d, pos, w_blk, w_pos)

    # Free reshape: (H*W, B*F) -> (H*W, B, F) is a pure split of the last dim.
    return out2d.reshape(HW, B, F)


def _reference_forward(x_nchw, weight, bias):
    # Pure-JAX reference mirroring the PyTorch forward.
    B, C, H, W = x_nchw.shape
    xx = jnp.broadcast_to(jnp.linspace(-1.0, 1.0, H)[None, None, :, None], (B, 1, H, W))
    yy = jnp.broadcast_to(jnp.linspace(-1.0, 1.0, W)[None, None, None, :], (B, 1, H, W))
    xc = jnp.concatenate([x_nchw, xx, yy], axis=1)               # (B, C+2, H, W)
    xc = xc.reshape(B, C + 2, H * W).transpose(0, 2, 1)          # (B, H*W, C+2)
    out = xc @ weight.T + bias                                   # (B, H*W, F)
    return out.transpose(1, 0, 2)                                # (H*W, B, F)


if __name__ == "__main__":
    B, n_kernels, H, W = 2, 4, 16, 16
    n_features = 32

    key = jax.random.PRNGKey(0)
    kx, kw, kb = jax.random.split(key, 3)

    x = jax.random.normal(kx, (B, n_kernels, H, W), dtype=jnp.float32)

    # nn.Linear(n_kernels+2, n_features) default init: U(-1/sqrt(fan_in), 1/sqrt(fan_in))
    fan_in = n_kernels + 2
    bound = 1.0 / (fan_in ** 0.5)
    weight = jax.random.uniform(kw, (n_features, fan_in), jnp.float32, -bound, bound)
    bias = jax.random.uniform(kb, (n_features,), jnp.float32, -bound, bound)

    out = positional_encoding_forward(x, weight, bias)
    out = jax.block_until_ready(out)

    ref = _reference_forward(x, weight, bias)
    assert out.shape == (H * W, B, n_features), out.shape
    assert jnp.allclose(out, ref, rtol=1e-5, atol=1e-5), "mismatch vs reference"

    print("KERNEL_OK")
</pallas_src>

<mosaic_0001>
module attributes {stable_mosaic.version = 11 : i64} {
  func.func @_pos_proj_kernel(%arg0: i32, %arg1: memref<8x128xf32, #tpu.memory_space<vmem>>, %arg2: memref<3x128xf32, #tpu.memory_space<vmem>>, %arg3: memref<8x64xf32, #tpu.memory_space<vmem>>, %arg4: memref<3x64xf32, #tpu.memory_space<vmem>>, %arg5: memref<128x64xf32, #tpu.memory_space<vmem>>) attributes {dimension_semantics = [#tpu.dimension_semantics<parallel>], iteration_bounds = array<i64: 2>, scalar_prefetch = 0 : i64, scratch_operands = 0 : i64, tpu.core_type = #tpu.core_type<tc>, window_params = [{transform_indices = @transform_0, window_bounds = array<i64: 8, 128>}, {transform_indices = @transform_1, window_bounds = array<i64: 3, 128>}, {pipeline_mode = #tpu.pipeline_mode<synchronous>, transform_indices = @transform_2, window_bounds = array<i64: 8, 64>}, {pipeline_mode = #tpu.pipeline_mode<synchronous>, transform_indices = @transform_3, window_bounds = array<i64: 3, 64>}, {transform_indices = @transform_4, window_bounds = array<i64: 128, 64>}]} {
    %c0 = arith.constant 0 : index
    %c0_0 = arith.constant 0 : index
    %0 = vector.load %arg1[%c0, %c0_0] : memref<8x128xf32, #tpu.memory_space<vmem>>, vector<8x128xf32>
    %c0_1 = arith.constant 0 : index
    %c0_2 = arith.constant 0 : index
    %1 = vector.load %arg3[%c0_1, %c0_2] : memref<8x64xf32, #tpu.memory_space<vmem>>, vector<8x64xf32>
    %cst = arith.constant dense<0.000000e+00> : vector<128x64xf32>
    %2 = tpu.matmul %0, %1, %cst {dimension_numbers = #tpu.dot_dimension_numbers<[0], [0], [1], [1], [0, 1, 1, 1], [], []>} : vector<8x128xf32>, vector<8x64xf32>, vector<128x64xf32> -> vector<128x64xf32>
    %c0_3 = arith.constant 0 : index
    %c0_4 = arith.constant 0 : index
    %3 = vector.load %arg2[%c0_3, %c0_4] : memref<3x128xf32, #tpu.memory_space<vmem>>, vector<3x128xf32>
    %c0_5 = arith.constant 0 : index
    %c0_6 = arith.constant 0 : index
    %4 = vector.load %arg4[%c0_5, %c0_6] : memref<3x64xf32, #tpu.memory_space<vmem>>, vector<3x64xf32>
    %cst_7 = arith.constant dense<0.000000e+00> : vector<128x64xf32>
    %5 = tpu.matmul %3, %4, %cst_7 {dimension_numbers = #tpu.dot_dimension_numbers<[0], [0], [1], [1], [0, 1, 1, 1], [], []>} : vector<3x128xf32>, vector<3x64xf32>, vector<128x64xf32> -> vector<128x64xf32>
    %6 = arith.addf %2, %5 : vector<128x64xf32>
    %c0_8 = arith.constant 0 : index
    %c0_9 = arith.constant 0 : index
    %7 = vector.load %arg5[%c0_8, %c0_9] : memref<128x64xf32, #tpu.memory_space<vmem>>, vector<128x64xf32>
    tpu.vector_store %arg5[%c0_8, %c0_9], %6 {strides = array<i32>} : memref<128x64xf32, #tpu.memory_space<vmem>>, vector<128x64xf32>,
    return
  }
  func.func @transform_0(%arg0: i32) -> (i32, i32) {
    %c0_i32 = arith.constant 0 : i32
    %c0_i32_0 = arith.constant 0 : i32
    return %c0_i32, %arg0 : i32, i32
  }
  func.func @transform_1(%arg0: i32) -> (i32, i32) {
    %c0_i32 = arith.constant 0 : i32
    %c0_i32_0 = arith.constant 0 : i32
    return %c0_i32, %arg0 : i32, i32
  }
  func.func @transform_2(%arg0: i32) -> (i32, i32) {
    %c0_i32 = arith.constant 0 : i32
    %c0_i32_0 = arith.constant 0 : i32
    %c0_i32_1 = arith.constant 0 : i32
    return %c0_i32, %c0_i32_0 : i32, i32
  }
  func.func @transform_3(%arg0: i32) -> (i32, i32) {
    %c0_i32 = arith.constant 0 : i32
    %c0_i32_0 = arith.constant 0 : i32
    %c0_i32_1 = arith.constant 0 : i32
    return %c0_i32, %c0_i32_0 : i32, i32
  }
  func.func @transform_4(%arg0: i32) -> (i32, i32) {
    %c0_i32 = arith.constant 0 : i32
    %c0_i32_0 = arith.constant 0 : i32
    return %arg0, %c0_i32 : i32, i32
  }
}

</mosaic_0001>

<llo_original>
// kernel: tpu_custom_call.1
$region0: #{tpu_custom_call.1}
  #allocation0 [shape = 'u32[]', space=smem, size = 0x4, offset = 0x4, fixed_abs, tag = 'smem constant byte address 0x4 - core index']
  #allocation1 [shape = 'u32[144,128]{1,0:T(1,128)}', space=vmem, size = 0x12000, scoped, tag = 'internal scratch']
  %s0 = inlined_call_operand.hbm [shape: f32[8,256], index: 0, kind: input, shape index: {}]
  %s1 = inlined_call_operand.hbm [shape: f32[3,256], index: 1, kind: input, shape index: {}]
  %s2 = inlined_call_operand.hbm [shape: f32[8,64], index: 2, kind: input, shape index: {}]
  %s3 = inlined_call_operand.vmem [shape: f32[3,64], index: 3, kind: input, shape index: {}]
  %s4 = inlined_call_operand.vmem [shape: f32[256,64], index: 4, kind: output, shape index: {}]
  %s5 = sld [smem:[#allocation0]]
  $region61: #{tpu_custom_call.1} parent=0
    _
  %s7 = ssub.s32 1, %s5
  %s8 = scalar_select 0, %s7, %s5
  $region1: #{tpu_custom_call.1} parent=0
    #allocation2 [shape = 'u8[8192]{0}', space=vmem, size = 0x2000, scoped, tag = 'input window, operand 0']
    #allocation3 [shape = 's32[2]{0}', space=sflag, size = 0x8, scoped, tag = 'scoped memory for tpu_custom_call.1']
    #allocation4 [shape = 'u8[4096]{0}', space=vmem, size = 0x1000, scoped, tag = 'input window, operand 1']
    #allocation5 [shape = 's32[2]{0}', space=sflag, size = 0x8, scoped, tag = 'scoped memory for tpu_custom_call.1']
    #allocation6 [shape = 'u8[4096]{0}', space=vmem, size = 0x1000, scoped, tag = 'input window, operand 2, single buffered']
    %9 = vsyncpa [#allocation3], 0
    %s10 = scalar_lea.sflag [#allocation3], 1
    %11 = vsyncpa %s10, 0
    %12 = vsyncpa [#allocation5], 0
    %s13 = scalar_lea.sflag [#allocation5], 1
    %14 = vsyncpa %s13, 0
    loop: start=0, step=1, limit=4
    $region2: #{tpu_custom_call.1} parent=1 // loop_pre_header
      _
    $region3: #{tpu_custom_call.1} parent=1 // loop_header
      %s16 = sphi 0, %s20
      %p17 = scmp.ge.s32.totalorder %s16, 4
      %s26 = sphi 0, %s28
      %s29 = sphi 0, %s26
      %s30 = sphi 0, %s29
      %s46 = sphi 0, %s30
      %s52 = sphi 0, %s54
      %s55 = sphi 0, %s52
      %s56 = sphi 0, %s55
      %s72 = sphi 0, %s56
      %s76 = sphi 0, %s76
      %s78 = sphi 0, %s76
      %s79 = sphi 0, %s78
      %s93 = sphi 0, %s79
      %s97 = sphi 0, %s97
      %s99 = sphi 0, %s97
      %s100 = sphi 0, %s99
      %s114 = sphi 0, %s100
      %s120 = sphi 0, %s122
      %s123 = sphi 0, %s120
      %s124 = sphi 0, %s123
      %s140 = sphi 0, %s124
    $region4: #{tpu_custom_call.1} parent=1 // loop_header_branch
      %19 = sbr.rel (%p17) target = $region8
    $region5: #{tpu_custom_call.1} parent=1 // loop_body
      %s21 = ssub.s32 %s16, 1
      %s22 = ssub.s32 %s16, 2
      %s23 = sadd.s32 %s16, 1
      %s24 = ssub.s32 %s16, %s23
      %p25 = scmp.eq.s32.totalorder %s24, 0
      %s27 = sadd.s32 %s26, 1
      %s28 = scalar_select %p25, %s26, %s27
      %p31 = pneg %p25
      %p32 = scmp.eq.s32.totalorder %s16, 1
      %p33 = por %p31, %p32
      %p34 = scmp.ne.s32.totalorder %s26, %s29
      %p35 = scmp.eq.s32.totalorder %s16, 0
      %p36 = por %p34, %p35
      %p37 = scmp.ne.s32.totalorder %s26, %s29
      %p38 = scmp.eq.s32.totalorder %s21, 1
      %p39 = por %p37, %p38
      %p40 = scmp.ne.s32.totalorder %s29, %s30
      %p41 = scmp.eq.s32.totalorder %s21, 0
      %p42 = por %p40, %p41
      %p43 = scmp.ne.s32.totalorder %s29, %s30
      %p44 = scmp.eq.s32.totalorder %s22, 1
      %p45 = por %p43, %p44
      %p47 = scmp.ne.s32.totalorder %s30, %s46
      %p48 = scmp.eq.s32.totalorder %s22, 0
      %p49 = por %p47, %p48
      %s50 = ssub.s32 %s16, %s23
      %p51 = scmp.eq.s32.totalorder %s50, 0
      %s53 = sadd.s32 %s52, 1
      %s54 = scalar_select %p51, %s52, %s53
      %p57 = pneg %p51
      %p58 = scmp.eq.s32.totalorder %s16, 1
      %p59 = por %p57, %p58
      %p60 = scmp.ne.s32.totalorder %s52, %s55
      %p61 = scmp.eq.s32.totalorder %s16, 0
      %p62 = por %p60, %p61
      %p63 = scmp.ne.s32.totalorder %s52, %s55
      %p64 = scmp.eq.s32.totalorder %s21, 1
      %p65 = por %p63, %p64
      %p66 = scmp.ne.s32.totalorder %s55, %s56
      %p67 = scmp.eq.s32.totalorder %s21, 0
      %p68 = por %p66, %p67
      %p69 = scmp.ne.s32.totalorder %s55, %s56
      %p70 = scmp.eq.s32.totalorder %s22, 1
      %p71 = por %p69, %p70
      %p73 = scmp.ne.s32.totalorder %s56, %s72
      %p74 = scmp.eq.s32.totalorder %s22, 0
      %p75 = por %p73, %p74
      %s77 = sadd.s32 %s76, 1
      %p80 = scmp.eq.s32.totalorder %s16, 1
      %p81 = scmp.ne.s32.totalorder %s76, %s78
      %p82 = scmp.eq.s32.totalorder %s16, 0
      %p83 = por %p81, %p82
      %p84 = scmp.ne.s32.totalorder %s76, %s78
      %p85 = scmp.eq.s32.totalorder %s21, 1
      %p86 = por %p84, %p85
      %p87 = scmp.ne.s32.totalorder %s78, %s79
      %p88 = scmp.eq.s32.totalorder %s21, 0
      %p89 = por %p87, %p88
      %p90 = scmp.ne.s32.totalorder %s78, %s79
      %p91 = scmp.eq.s32.totalorder %s22, 1
      %p92 = por %p90, %p91
      %p94 = scmp.ne.s32.totalorder %s79, %s93
      %p95 = scmp.eq.s32.totalorder %s22, 0
      %p96 = por %p94, %p95
      %s98 = sadd.s32 %s97, 1
      %p101 = scmp.eq.s32.totalorder %s16, 1
      %p102 = scmp.ne.s32.totalorder %s97, %s99
      %p103 = scmp.eq.s32.totalorder %s16, 0
      %p104 = por %p102, %p103
      %p105 = scmp.ne.s32.totalorder %s97, %s99
      %p106 = scmp.eq.s32.totalorder %s21, 1
      %p107 = por %p105, %p106
      %p108 = scmp.ne.s32.totalorder %s99, %s100
      %p109 = scmp.eq.s32.totalorder %s21, 0
      %p110 = por %p108, %p109
      %p111 = scmp.ne.s32.totalorder %s99, %s100
      %p112 = scmp.eq.s32.totalorder %s22, 1
      %p113 = por %p111, %p112
      %p115 = scmp.ne.s32.totalorder %s100, %s114
      %p116 = scmp.eq.s32.totalorder %s22, 0
      %p117 = por %p115, %p116
      %s118 = ssub.s32 %s16, %s23
      %p119 = scmp.eq.s32.totalorder %s118, 0
      %s121 = sadd.s32 %s120, 1
      %s122 = scalar_select %p119, %s120, %s121
      %p125 = pneg %p119
      %p126 = scmp.eq.s32.totalorder %s16, 1
      %p127 = por %p125, %p126
      %p128 = scmp.ne.s32.totalorder %s120, %s123
      %p129 = scmp.eq.s32.totalorder %s16, 0
      %p130 = por %p128, %p129
      %p131 = scmp.ne.s32.totalorder %s120, %s123
      %p132 = scmp.eq.s32.totalorder %s21, 1
      %p133 = por %p131, %p132
      %p134 = scmp.ne.s32.totalorder %s123, %s124
      %p135 = scmp.eq.s32.totalorder %s21, 0
      %p136 = por %p134, %p135
      %p137 = scmp.ne.s32.totalorder %s123, %s124
      %p138 = scmp.eq.s32.totalorder %s22, 1
      %p139 = por %p137, %p138
      %p141 = scmp.ne.s32.totalorder %s124, %s140
      %p142 = scmp.eq.s32.totalorder %s22, 0
      %p143 = por %p141, %p142
      %p144 = scmp.le.s32.totalorder 1, %s16
      %p145 = scmp.lt.s32.totalorder %s16, 3
      %p146 = pnand %p144, %p145
      %p147 = pneg %p146
      // Predicated region
      $region9: #{tpu_custom_call.1} parent=5 // pred_check
        _
      $region10: #{tpu_custom_call.1} parent=5 // pred_check_branch
        %149 = sbr.rel (%p146) target = $region12
      $region11: #{tpu_custom_call.1} parent=5 // pred_region
        %s150 = ssub.s32 %s16, 1
        // Predicated region
        $region13: #{tpu_custom_call.1} parent=11 // pred_check
          %p151 = pneg %p89
        $region14: #{tpu_custom_call.1} parent=11 // pred_check_branch
          %153 = sbr.rel (%p151) target = $region16
        $region15: #{tpu_custom_call.1} parent=11 // pred_region
          %s155 = ssub.s32 128, 128
          %156 = vsyncadd [#allocation5], %s155
          %s158 = sshll.u32 [#allocation6], 4
          %s159 = int_to_ptr.vmem [resolvable:$true] %s158
          %161 = dma.hbm_to_vmem [thread:$0]  %s2, 128, %s159, [#allocation5]
        $region16: #{tpu_custom_call.1} parent=11 // pred_fallthru
          _
        // Predicated region
        $region17: #{tpu_custom_call.1} parent=11 // pred_check
          %p162 = pneg %p110
        $region18: #{tpu_custom_call.1} parent=11 // pred_check_branch
          %164 = sbr.rel (%p162) target = $region20
        $region19: #{tpu_custom_call.1} parent=11 // pred_region
          _
        $region20: #{tpu_custom_call.1} parent=11 // pred_fallthru
          _
      $region12: #{tpu_custom_call.1} parent=5 // pred_fallthru
        _
      %p165 = scmp.lt.s32.totalorder %s16, 2
      // Predicated region
      $region21: #{tpu_custom_call.1} parent=5 // pred_check
        %p166 = pneg %p165
      $region22: #{tpu_custom_call.1} parent=5 // pred_check_branch
        %168 = sbr.rel (%p166) target = $region24
      $region23: #{tpu_custom_call.1} parent=5 // pred_region
        // Predicated region
        $region25: #{tpu_custom_call.1} parent=23 // pred_check
          %p169 = pneg %p36
        $region26: #{tpu_custom_call.1} parent=23 // pred_check_branch
          %171 = sbr.rel (%p169) target = $region28
        $region27: #{tpu_custom_call.1} parent=23 // pred_region
          %s172 = sand.u32 %s26, 1
          %s173 = scalar_lea.sflag [#allocation3], %s172
          %s174 = sand.u32 %s26, 1
          %s175 = smul.addr %s174, 8
          %s176 = scalar_lea.vmem [#allocation2], %s175
          %s178 = ssub.s32 128, 128
          %179 = vsyncadd %s173, %s178
          %s180 = smul.addr %s16, 128
          %s181 = scalar_lea.hbm %s0, %s180
          %s183 = sshll.u32 %s176, 4
          %s184 = int_to_ptr.vmem [resolvable:$true] %s183
          %186 = dma.hbm_to_vmem [thread:$0]  %s181, 128, %s184, %s173
        $region28: #{tpu_custom_call.1} parent=23 // pred_fallthru
          _
        // Predicated region
        $region29: #{tpu_custom_call.1} parent=23 // pred_check
          %p187 = pneg %p62
        $region30: #{tpu_custom_call.1} parent=23 // pred_check_branch
          %189 = sbr.rel (%p187) target = $region32
        $region31: #{tpu_custom_call.1} parent=23 // pred_region
          %s190 = sand.u32 %s16, 1
          %s191 = scalar_lea.sflag [#allocation5], %s190
          %s192 = sand.u32 %s52, 1
          %s193 = smul.addr %s192, 4
          %s194 = scalar_lea.vmem [#allocation4], %s193
          %s196 = ssub.s32 64, 64
          %197 = vsyncadd %s191, %s196
          %s198 = smul.addr %s16, 64
          %s199 = scalar_lea.hbm %s1, %s198
          %s201 = sshll.u32 %s194, 4
          %s202 = int_to_ptr.vmem [resolvable:$true] %s201
          %204 = dma.hbm_to_vmem [thread:$0]  %s199, 64, %s202, %s191
        $region32: #{tpu_custom_call.1} parent=23 // pred_fallthru
          _
      $region24: #{tpu_custom_call.1} parent=5 // pred_fallthru
        _
      %p205 = scmp.le.s32.totalorder 1, %s16
      %p206 = scmp.lt.s32.totalorder %s16, 3
      %p207 = pnand %p205, %p206
      %p208 = pneg %p207
      // Predicated region
      $region33: #{tpu_custom_call.1} parent=5 // pred_check
        _
      $region34: #{tpu_custom_call.1} parent=5 // pred_check_branch
        %210 = sbr.rel (%p207) target = $region36
      $region35: #{tpu_custom_call.1} parent=5 // pred_region
        %s211 = ssub.s32 %s16, 1
        %s212 = sand.u32 %s29, 1
        %s213 = scalar_lea.sflag [#allocation3], %s212
        %s214 = sand.u32 %s29, 1
        %s215 = smul.addr %s214, 8
        %s216 = scalar_lea.vmem [#allocation2], %s215
        // Predicated region
        $region37: #{tpu_custom_call.1} parent=35 // pred_check
          %p217 = pneg %p42
        $region38: #{tpu_custom_call.1} parent=35 // pred_check_branch
          %219 = sbr.rel (%p217) target = $region40
        $region39: #{tpu_custom_call.1} parent=35 // pred_region
          %220 = dma.done %s213, 128
        $region40: #{tpu_custom_call.1} parent=35 // pred_fallthru
          _
        %s221 = sand.u32 %s21, 1
        %s222 = scalar_lea.sflag [#allocation5], %s221
        %s223 = sand.u32 %s55, 1
        %s224 = smul.addr %s223, 4
        %s225 = scalar_lea.vmem [#allocation4], %s224
        // Predicated region
        $region41: #{tpu_custom_call.1} parent=35 // pred_check
          %p226 = pneg %p68
        $region42: #{tpu_custom_call.1} parent=35 // pred_check_branch
          %228 = sbr.rel (%p226) target = $region44
        $region43: #{tpu_custom_call.1} parent=35 // pred_region
          %229 = dma.done %s222, 64
        $region44: #{tpu_custom_call.1} parent=35 // pred_fallthru
          _
        // Predicated region
        $region45: #{tpu_custom_call.1} parent=35 // pred_check
          %p230 = pneg %p89
        $region46: #{tpu_custom_call.1} parent=35 // pred_check_branch
          %232 = sbr.rel (%p230) target = $region48
        $region47: #{tpu_custom_call.1} parent=35 // pred_region
          %233 = dma.done [#allocation5], 128
        $region48: #{tpu_custom_call.1} parent=35 // pred_fallthru
          _
        %s234 = sand.u32 %s29, 1
        %s235 = scalar_lea.sflag [#allocation3], %s234
        %s236 = sand.u32 %s29, 1
        %s237 = smul.addr %s236, 8
        %s238 = scalar_lea.vmem [#allocation2], %s237
        %p239 = pneg %p42
        %p240 = pneg %p39
        %s241 = sand.u32 %s21, 1
        %s242 = scalar_lea.sflag [#allocation5], %s241
        %s243 = sand.u32 %s55, 1
        %s244 = smul.addr %s243, 4
        %s245 = scalar_lea.vmem [#allocation4], %s244
        %p246 = pneg %p68
        %p247 = pneg %p65
        %p248 = pneg %p89
        %p249 = pneg %p86
        %p250 = pneg %p110
        %p251 = pneg %p107
        %p252 = pneg %p136
        %p253 = pneg %p133
        %s254 = smul.u32 16, %s21
        %p255 = scmp.lt.s32.totalorder %s254, 31
        %s256 = scalar_select %p255, %s254, 31
        %s257 = smul.addr %s256, 8
        %s258 = scalar_lea.vmem %s4, %s257
        %s259 = smul.u32 16, %s21
        %p260 = scmp.lt.s32.totalorder %s259, 31
        %s261 = scalar_select %p260, %s259, 31
        %s262 = smul.addr %s261, 8
        %s263 = scalar_lea.vmem %s4, %s262
        %s264 = smul.u32 16, %s21
        %v265 = vld [vmem:[%s216] sm:$0xff]
        %v266 = vld [vmem:[#allocation6] sm:$0xff]
        %v267 = vld [vmem:[%s225] sm:$0x7]
        %v268 = vld [vmem:[%s3] sm:$0x7]
        %269 = vxpose.xlu0.b32.start [1/16] %v267, 128
        %270 = vxpose.xlu0.b32.cont [2/16] 0.0, 128
        %271 = vxpose.xlu0.b32.cont [3/16] 0.0, 128
        %272 = vxpose.xlu0.b32.cont [4/16] 0.0, 128
        %273 = vxpose.xlu0.b32.cont [5/16] 0.0, 128
        %274 = vxpose.xlu0.b32.cont [6/16] 0.0, 128
        %275 = vxpose.xlu0.b32.cont [7/16] 0.0, 128
        %276 = vxpose.xlu0.b32.cont [8/16] 0.0, 128
        %277 = vxpose.xlu0.b32.cont [9/16] 0.0, 128
        %278 = vxpose.xlu0.b32.cont [10/16] 0.0, 128
        %279 = vxpose.xlu0.b32.cont [11/16] 0.0, 128
        %280 = vxpose.xlu0.b32.cont [12/16] 0.0, 128
        %281 = vxpose.xlu0.b32.cont [13/16] 0.0, 128
        %282 = vxpose.xlu0.b32.cont [14/16] 0.0, 128
        %283 = vxpose.xlu0.b32.cont [15/16] 0.0, 128
        %284 = vxpose.xlu0.b32.end [16/16] 0.0, 128
        %v285 = vpop.trf.xlu0
        %v286 = vpop.trf.xlu0
        %v287 = vpop.trf.xlu0
        %v288 = vpop.trf.xlu0
        %v289 = vpop.trf.xlu0
        %v290 = vpop.trf.xlu0
        %v291 = vpop.trf.xlu0
        %v292 = vpop.trf.xlu0
        %v293 = vpop.trf.xlu0
        %v294 = vpop.trf.xlu0
        %v295 = vpop.trf.xlu0
        %v296 = vpop.trf.xlu0
        %v297 = vpop.trf.xlu0
        %v298 = vpop.trf.xlu0
        %v299 = vpop.trf.xlu0
        %v300 = vpop.trf.xlu0
        %vm301 = vcmask 23552
        %v303 = vsel %vm301, %v285, 0
        %v306 = vsel %vm301, %v286, 0
        %v309 = vsel %vm301, %v287, 0
        %v312 = vsel %vm301, %v288, 0
        %v315 = vsel %vm301, %v289, 0
        %v318 = vsel %vm301, %v290, 0
        %v321 = vsel %vm301, %v291, 0
        %v324 = vsel %vm301, %v292, 0
        %v327 = vsel %vm301, %v293, 0
        %v330 = vsel %vm301, %v294, 0
        %v333 = vsel %vm301, %v295, 0
        %v336 = vsel %vm301, %v296, 0
        %v339 = vsel %vm301, %v297, 0
        %v342 = vsel %vm301, %v298, 0
        %v345 = vsel %vm301, %v299, 0
        %v348 = vsel %vm301, %v300, 0
        %vm350 = vcmask 1042432
        %v352 = vsel %vm350, %v268, 0
        %354 = vmatprep.subr.mxu0 0.0
        %355 = vmatpush1.msra.mxu0 %v352
        %356 = vmatprep.subr.mxu0 0.0
        %357 = vmatpush1.msra.mxu0 0.0
        %358 = vmatprep.subr.mxu0 0.0
        %359 = vmatpush1.msra.mxu0 0.0
        %360 = vmatprep.subr.mxu0 0.0
        %361 = vmatpush1.msra.mxu0 0.0
        %362 = vmatprep.subr.mxu0 0.0
        %363 = vmatpush1.msra.mxu0 0.0
        %364 = vmatprep.subr.mxu0 0.0
        %365 = vmatpush1.msra.mxu0 0.0
        %366 = vmatprep.subr.mxu0 0.0
        %367 = vmatpush1.msra.mxu0 0.0
        %368 = vmatprep.subr.mxu0 0.0
        %369 = vmatpush1.msra.mxu0 0.0
        %370 = vmatprep.subr.mxu0 0.0
        %371 = vmatpush1.msra.mxu0 0.0
        %372 = vmatprep.subr.mxu0 0.0
        %373 = vmatpush1.msra.mxu0 0.0
        %374 = vmatprep.subr.mxu0 0.0
        %375 = vmatpush1.msra.mxu0 0.0
        %376 = vmatprep.subr.mxu0 0.0
        %377 = vmatpush1.msra.mxu0 0.0
        %378 = vmatprep.subr.mxu0 0.0
        %379 = vmatpush1.msra.mxu0 0.0
        %380 = vmatprep.subr.mxu0 0.0
        %381 = vmatpush1.msra.mxu0 0.0
        %382 = vmatprep.subr.mxu0 0.0
        %383 = vmatpush1.msra.mxu0 0.0
        %384 = vmatprep.subr.mxu0 0.0
        %385 = vmatpush1.msra.mxu0 0.0
        %386 = vmatprep.subr.mxu0 0.0
        %387 = vmatpush1.msra.mxu0 0.0
        %388 = vmatprep.subr.mxu0 0.0
        %389 = vmatpush1.msra.mxu0 0.0
        %390 = vmatprep.subr.mxu0 0.0
        %391 = vmatpush1.msra.mxu0 0.0
        %392 = vmatprep.subr.mxu0 0.0
        %393 = vmatpush1.msra.mxu0 0.0
        %394 = vmatprep.subr.mxu0 0.0
        %395 = vmatpush1.msra.mxu0 0.0
        %396 = vmatprep.subr.mxu0 0.0
        %397 = vmatpush1.msra.mxu0 0.0
        %398 = vmatprep.subr.mxu0 0.0
        %399 = vmatpush1.msra.mxu0 0.0
        %400 = vmatprep.subr.mxu0 0.0
        %401 = vmatpush1.msra.mxu0 0.0
        %402 = vmatprep.subr.mxu0 0.0
        %403 = vmatpush1.msra.mxu0 0.0
        %404 = vmatprep.subr.mxu0 0.0
        %405 = vmatpush1.msra.mxu0 0.0
        %406 = vmatprep.subr.mxu0 0.0
        %407 = vmatpush1.msra.mxu0 0.0
        %408 = vmatprep.subr.mxu0 0.0
        %409 = vmatpush1.msra.mxu0 0.0
        %410 = vmatprep.subr.mxu0 0.0
        %411 = vmatpush1.msra.mxu0 0.0
        %412 = vmatprep.subr.mxu0 0.0
        %413 = vmatpush1.msra.mxu0 0.0
        %414 = vmatprep.subr.mxu0 0.0
        %415 = vmatpush1.msra.mxu0 0.0
        %416 = vmatprep.subr.mxu0 0.0
        %417 = vmatpush1.msra.mxu0 0.0
        %418 = vmatprep.mubr.f32.mxu0 0.0
        %419 = vmatmul.mubr.f32.gmra.mrb[0].mxu0 %v303
        %v420 = vpop.f32.mrb[0].mxu0
        %v421 = vadd.f32 0.0, %v420
        %v422 = vpop.f32.mrb[0].mxu0
        %423 = vmatprep.mubr.f32.mxu0 0.0
        %424 = vmatmul.mubr.f32.gmra.mrb[0].mxu0 %v306
        %v425 = vpop.f32.mrb[0].mxu0
        %v426 = vadd.f32 0.0, %v425
        %v427 = vpop.f32.mrb[0].mxu0
        %428 = vmatprep.mubr.f32.mxu0 0.0
        %429 = vmatmul.mubr.f32.gmra.mrb[0].mxu0 %v309
        %v430 = vpop.f32.mrb[0].mxu0
        %v431 = vadd.f32 0.0, %v430
        %v432 = vpop.f32.mrb[0].mxu0
        %433 = vmatprep.mubr.f32.mxu0 0.0
        %434 = vmatmul.mubr.f32.gmra.mrb[0].mxu0 %v312
        %v435 = vpop.f32.mrb[0].mxu0
        %v436 = vadd.f32 0.0, %v435
        %v437 = vpop.f32.mrb[0].mxu0
        %438 = vmatprep.mubr.f32.mxu0 0.0
        %439 = vmatmul.mubr.f32.gmra.mrb[0].mxu0 %v315
        %v440 = vpop.f32.mrb[0].mxu0
        %v441 = vadd.f32 0.0, %v440
        %v442 = vpop.f32.mrb[0].mxu0
        %443 = vmatprep.mubr.f32.mxu0 0.0
        %444 = vmatmul.mubr.f32.gmra.mrb[0].mxu0 %v318
        %v445 = vpop.f32.mrb[0].mxu0
        %v446 = vadd.f32 0.0, %v445
        %v447 = vpop.f32.mrb[0].mxu0
        %448 = vmatprep.mubr.f32.mxu0 0.0
        %449 = vmatmul.mubr.f32.gmra.mrb[0].mxu0 %v321
        %v450 = vpop.f32.mrb[0].mxu0
        %v451 = vadd.f32 0.0, %v450
        %v452 = vpop.f32.mrb[0].mxu0
        %453 = vmatprep.mubr.f32.mxu0 0.0
        %454 = vmatmul.mubr.f32.gmra.mrb[0].mxu0 %v324
        %v455 = vpop.f32.mrb[0].mxu0
        %v456 = vadd.f32 0.0, %v455
        %v457 = vpop.f32.mrb[0].mxu0
        %458 = vmatprep.mubr.f32.mxu0 0.0
        %459 = vmatmul.mubr.f32.gmra.mrb[0].mxu0 %v327
        %v460 = vpop.f32.mrb[0].mxu0
        %v461 = vadd.f32 0.0, %v460
        %v462 = vpop.f32.mrb[0].mxu0
        %463 = vmatprep.mubr.f32.mxu0 0.0
        %464 = vmatmul.mubr.f32.gmra.mrb[0].mxu0 %v330
        %v465 = vpop.f32.mrb[0].mxu0
        %v466 = vadd.f32 0.0, %v465
        %v467 = vpop.f32.mrb[0].mxu0
        %468 = vmatprep.mubr.f32.mxu0 0.0
        %469 = vmatmul.mubr.f32.gmra.mrb[0].mxu0 %v333
        %v470 = vpop.f32.mrb[0].mxu0
        %v471 = vadd.f32 0.0, %v470
        %v472 = vpop.f32.mrb[0].mxu0
        %473 = vmatprep.mubr.f32.mxu0 0.0
        %474 = vmatmul.mubr.f32.gmra.mrb[0].mxu0 %v336
        %v475 = vpop.f32.mrb[0].mxu0
        %v476 = vadd.f32 0.0, %v475
        %v477 = vpop.f32.mrb[0].mxu0
        %478 = vmatprep.mubr.f32.mxu0 0.0
        %479 = vmatmul.mubr.f32.gmra.mrb[0].mxu0 %v339
        %v480 = vpop.f32.mrb[0].mxu0
        %v481 = vadd.f32 0.0, %v480
        %v482 = vpop.f32.mrb[0].mxu0
        %483 = vmatprep.mubr.f32.mxu0 0.0
        %484 = vmatmul.mubr.f32.gmra.mrb[0].mxu0 %v342
        %v485 = vpop.f32.mrb[0].mxu0
        %v486 = vadd.f32 0.0, %v485
        %v487 = vpop.f32.mrb[0].mxu0
        %488 = vmatprep.mubr.f32.mxu0 0.0
        %489 = vmatmul.mubr.f32.gmra.mrb[0].mxu0 %v345
        %v490 = vpop.f32.mrb[0].mxu0
        %v491 = vadd.f32 0.0, %v490
        %v492 = vpop.f32.mrb[0].mxu0
        %493 = vmatprep.mubr.f32.mxu0 0.0
        %494 = vmatmul.mubr.f32.gmra.mrb[0].mxu0 %v348
        %v495 = vpop.f32.mrb[0].mxu0
        %v496 = vadd.f32 0.0, %v495
        %v497 = vpop.f32.mrb[0].mxu0
        %498 = vdwg.mxu0
        %499 = vxpose.xlu0.b32.start [1/16] %v265, 128
        %500 = vxpose.xlu0.b32.cont [2/16] 0.0, 128
        %501 = vxpose.xlu0.b32.cont [3/16] 0.0, 128
        %502 = vxpose.xlu0.b32.cont [4/16] 0.0, 128
        %503 = vxpose.xlu0.b32.cont [5/16] 0.0, 128
        %504 = vxpose.xlu0.b32.cont [6/16] 0.0, 128
        %505 = vxpose.xlu0.b32.cont [7/16] 0.0, 128
        %506 = vxpose.xlu0.b32.cont [8/16] 0.0, 128
        %507 = vxpose.xlu0.b32.cont [9/16] 0.0, 128
        %508 = vxpose.xlu0.b32.cont [10/16] 0.0, 128
        %509 = vxpose.xlu0.b32.cont [11/16] 0.0, 128
        %510 = vxpose.xlu0.b32.cont [12/16] 0.0, 128
        %511 = vxpose.xlu0.b32.cont [13/16] 0.0, 128
        %512 = vxpose.xlu0.b32.cont [14/16] 0.0, 128
        %513 = vxpose.xlu0.b32.cont [15/16] 0.0, 128
        %514 = vxpose.xlu0.b32.end [16/16] 0.0, 128
        %v515 = vpop.trf.xlu0
        %v516 = vpop.trf.xlu0
        %v517 = vpop.trf.xlu0
        %v518 = vpop.trf.xlu0
        %v519 = vpop.trf.xlu0
        %v520 = vpop.trf.xlu0
        %v521 = vpop.trf.xlu0
        %v522 = vpop.trf.xlu0
        %v523 = vpop.trf.xlu0
        %v524 = vpop.trf.xlu0
        %v525 = vpop.trf.xlu0
        %v526 = vpop.trf.xlu0
        %v527 = vpop.trf.xlu0
        %v528 = vpop.trf.xlu0
        %v529 = vpop.trf.xlu0
        %v530 = vpop.trf.xlu0
        %vm531 = vcmask 64512
        %v533 = vsel %vm531, %v515, 0
        %v536 = vsel %vm531, %v516, 0
        %v539 = vsel %vm531, %v517, 0
        %v542 = vsel %vm531, %v518, 0
        %v545 = vsel %vm531, %v519, 0
        %v548 = vsel %vm531, %v520, 0
        %v551 = vsel %vm531, %v521, 0
        %v554 = vsel %vm531, %v522, 0
        %v557 = vsel %vm531, %v523, 0
        %v560 = vsel %vm531, %v524, 0
        %v563 = vsel %vm531, %v525, 0
        %v566 = vsel %vm531, %v526, 0
        %v569 = vsel %vm531, %v527, 0
        %v572 = vsel %vm531, %v528, 0
        %v575 = vsel %vm531, %v529, 0
        %v578 = vsel %vm531, %v530, 0
        %580 = vmatprep.subr.mxu0 0.0
        %581 = vmatpush1.msra.mxu0 %v266
        %582 = vmatprep.subr.mxu0 0.0
        %583 = vmatpush1.msra.mxu0 0.0
        %584 = vmatprep.subr.mxu0 0.0
        %585 = vmatpush1.msra.mxu0 0.0
        %586 = vmatprep.subr.mxu0 0.0
        %587 = vmatpush1.msra.mxu0 0.0
        %588 = vmatprep.subr.mxu0 0.0
        %589 = vmatpush1.msra.mxu0 0.0
        %590 = vmatprep.subr.mxu0 0.0
        %591 = vmatpush1.msra.mxu0 0.0
        %592 = vmatprep.subr.mxu0 0.0
        %593 = vmatpush1.msra.mxu0 0.0
        %594 = vmatprep.subr.mxu0 0.0
        %595 = vmatpush1.msra.mxu0 0.0
        %596 = vmatprep.subr.mxu0 0.0
        %597 = vmatpush1.msra.mxu0 0.0
        %598 = vmatprep.subr.mxu0 0.0
        %599 = vmatpush1.msra.mxu0 0.0
        %600 = vmatprep.subr.mxu0 0.0
        %601 = vmatpush1.msra.mxu0 0.0
        %602 = vmatprep.subr.mxu0 0.0
        %603 = vmatpush1.msra.mxu0 0.0
        %604 = vmatprep.subr.mxu0 0.0
        %605 = vmatpush1.msra.mxu0 0.0
        %606 = vmatprep.subr.mxu0 0.0
        %607 = vmatpush1.msra.mxu0 0.0
        %608 = vmatprep.subr.mxu0 0.0
        %609 = vmatpush1.msra.mxu0 0.0
        %610 = vmatprep.subr.mxu0 0.0
        %611 = vmatpush1.msra.mxu0 0.0
        %612 = vmatprep.subr.mxu0 0.0
        %613 = vmatpush1.msra.mxu0 0.0
        %614 = vmatprep.subr.mxu0 0.0
        %615 = vmatpush1.msra.mxu0 0.0
        %616 = vmatprep.subr.mxu0 0.0
        %617 = vmatpush1.msra.mxu0 0.0
        %618 = vmatprep.subr.mxu0 0.0
        %619 = vmatpush1.msra.mxu0 0.0
        %620 = vmatprep.subr.mxu0 0.0
        %621 = vmatpush1.msra.mxu0 0.0
        %622 = vmatprep.subr.mxu0 0.0
        %623 = vmatpush1.msra.mxu0 0.0
        %624 = vmatprep.subr.mxu0 0.0
        %625 = vmatpush1.msra.mxu0 0.0
        %626 = vmatprep.subr.mxu0 0.0
        %627 = vmatpush1.msra.mxu0 0.0
        %628 = vmatprep.subr.mxu0 0.0
        %629 = vmatpush1.msra.mxu0 0.0
        %630 = vmatprep.subr.mxu0 0.0
        %631 = vmatpush1.msra.mxu0 0.0
        %632 = vmatprep.subr.mxu0 0.0
        %633 = vmatpush1.msra.mxu0 0.0
        %634 = vmatprep.subr.mxu0 0.0
        %635 = vmatpush1.msra.mxu0 0.0
        %636 = vmatprep.subr.mxu0 0.0
        %637 = vmatpush1.msra.mxu0 0.0
        %638 = vmatprep.subr.mxu0 0.0
        %639 = vmatpush1.msra.mxu0 0.0
        %640 = vmatprep.subr.mxu0 0.0
        %641 = vmatpush1.msra.mxu0 0.0
        %642 = vmatprep.subr.mxu0 0.0
        %643 = vmatpush1.msra.mxu0 0.0
        %644 = vmatprep.mubr.f32.mxu0 0.0
        %645 = vmatmul.mubr.f32.gmra.mrb[0].mxu0 %v533
        %v646 = vpop.f32.mrb[0].mxu0
        %v647 = vadd.f32 %v421, %v646
        %v648 = vpop.f32.mrb[0].mxu0
        %649 = vmatprep.mubr.f32.mxu0 0.0
        %650 = vmatmul.mubr.f32.gmra.mrb[0].mxu0 %v536
        %v651 = vpop.f32.mrb[0].mxu0
        %v652 = vadd.f32 %v426, %v651
        %v653 = vpop.f32.mrb[0].mxu0
        %654 = vmatprep.mubr.f32.mxu0 0.0
        %655 = vmatmul.mubr.f32.gmra.mrb[0].mxu0 %v539
        %v656 = vpop.f32.mrb[0].mxu0
        %v657 = vadd.f32 %v431, %v656
        %v658 = vpop.f32.mrb[0].mxu0
        %659 = vmatprep.mubr.f32.mxu0 0.0
        %660 = vmatmul.mubr.f32.gmra.mrb[0].mxu0 %v542
        %v661 = vpop.f32.mrb[0].mxu0
        %v662 = vadd.f32 %v436, %v661
        %v663 = vpop.f32.mrb[0].mxu0
        %664 = vmatprep.mubr.f32.mxu0 0.0
        %665 = vmatmul.mubr.f32.gmra.mrb[0].mxu0 %v545
        %v666 = vpop.f32.mrb[0].mxu0
        %v667 = vadd.f32 %v441, %v666
        %v668 = vpop.f32.mrb[0].mxu0
        %669 = vmatprep.mubr.f32.mxu0 0.0
        %670 = vmatmul.mubr.f32.gmra.mrb[0].mxu0 %v548
        %v671 = vpop.f32.mrb[0].mxu0
        %v672 = vadd.f32 %v446, %v671
        %v673 = vpop.f32.mrb[0].mxu0
        %674 = vmatprep.mubr.f32.mxu0 0.0
        %675 = vmatmul.mubr.f32.gmra.mrb[0].mxu0 %v551
        %v676 = vpop.f32.mrb[0].mxu0
        %v677 = vadd.f32 %v451, %v676
        %v678 = vpop.f32.mrb[0].mxu0
        %679 = vmatprep.mubr.f32.mxu0 0.0
        %680 = vmatmul.mubr.f32.gmra.mrb[0].mxu0 %v554
        %v681 = vpop.f32.mrb[0].mxu0
        %v682 = vadd.f32 %v456, %v681
        %v683 = vpop.f32.mrb[0].mxu0
        %684 = vmatprep.mubr.f32.mxu0 0.0
        %685 = vmatmul.mubr.f32.gmra.mrb[0].mxu0 %v557
        %v686 = vpop.f32.mrb[0].mxu0
        %v687 = vadd.f32 %v461, %v686
        %v688 = vpop.f32.mrb[0].mxu0
        %689 = vmatprep.mubr.f32.mxu0 0.0
        %690 = vmatmul.mubr.f32.gmra.mrb[0].mxu0 %v560
        %v691 = vpop.f32.mrb[0].mxu0
        %v692 = vadd.f32 %v466, %v691
        %v693 = vpop.f32.mrb[0].mxu0
        %694 = vmatprep.mubr.f32.mxu0 0.0
        %695 = vmatmul.mubr.f32.gmra.mrb[0].mxu0 %v563
        %v696 = vpop.f32.mrb[0].mxu0
        %v697 = vadd.f32 %v471, %v696
        %v698 = vpop.f32.mrb[0].mxu0
        %699 = vmatprep.mubr.f32.mxu0 0.0
        %700 = vmatmul.mubr.f32.gmra.mrb[0].mxu0 %v566
        %v701 = vpop.f32.mrb[0].mxu0
        %v702 = vadd.f32 %v476, %v701
        %v703 = vpop.f32.mrb[0].mxu0
        %704 = vmatprep.mubr.f32.mxu0 0.0
        %705 = vmatmul.mubr.f32.gmra.mrb[0].mxu0 %v569
        %v706 = vpop.f32.mrb[0].mxu0
        %v707 = vadd.f32 %v481, %v706
        %v708 = vpop.f32.mrb[0].mxu0
        %709 = vmatprep.mubr.f32.mxu0 0.0
        %710 = vmatmul.mubr.f32.gmra.mrb[0].mxu0 %v572
        %v711 = vpop.f32.mrb[0].mxu0
        %v712 = vadd.f32 %v486, %v711
        %v713 = vpop.f32.mrb[0].mxu0
        %714 = vmatprep.mubr.f32.mxu0 0.0
        %715 = vmatmul.mubr.f32.gmra.mrb[0].mxu0 %v575
        %v716 = vpop.f32.mrb[0].mxu0
        %v717 = vadd.f32 %v491, %v716
        %v718 = vpop.f32.mrb[0].mxu0
        %719 = vmatprep.mubr.f32.mxu0 0.0
        %720 = vmatmul.mubr.f32.gmra.mrb[0].mxu0 %v578
        %v721 = vpop.f32.mrb[0].mxu0
        %v722 = vadd.f32 %v496, %v721
        %v723 = vpop.f32.mrb[0].mxu0
        %724 = vdwg.mxu0
        %vm725 = vcmask 523264
        %726 = vst.msk [vmem:[%s263] sm:$0xff] %vm725, %v647
        %727 = vst.msk [vmem:[%s263 + $0x8] sm:$0xff] %vm725, %v652
        %728 = vst.msk [vmem:[%s263 + $0x10] sm:$0xff] %vm725, %v657
        %729 = vst.msk [vmem:[%s263 + $0x18] sm:$0xff] %vm725, %v662
        %730 = vst.msk [vmem:[%s263 + $0x20] sm:$0xff] %vm725, %v667
        %731 = vst.msk [vmem:[%s263 + $0x28] sm:$0xff] %vm725, %v672
        %732 = vst.msk [vmem:[%s263 + $0x30] sm:$0xff] %vm725, %v677
        %733 = vst.msk [vmem:[%s263 + $0x38] sm:$0xff] %vm725, %v682
        %734 = vst.msk [vmem:[%s263 + $0x40] sm:$0xff] %vm725, %v687
        %735 = vst.msk [vmem:[%s263 + $0x48] sm:$0xff] %vm725, %v692
        %736 = vst.msk [vmem:[%s263 + $0x50] sm:$0xff] %vm725, %v697
        %737 = vst.msk [vmem:[%s263 + $0x58] sm:$0xff] %vm725, %v702
        %738 = vst.msk [vmem:[%s263 + $0x60] sm:$0xff] %vm725, %v707
        %739 = vst.msk [vmem:[%s263 + $0x68] sm:$0xff] %vm725, %v712
        %740 = vst.msk [vmem:[%s263 + $0x70] sm:$0xff] %vm725, %v717
        %741 = vst.msk [vmem:[%s263 + $0x78] sm:$0xff] %vm725, %v722
        %s742 = smul.u32 16, %s21
        %p743 = scmp.lt.s32.totalorder %s742, 31
        %s744 = scalar_select %p743, %s742, 31
        %s745 = smul.addr %s744, 8
        %s746 = scalar_lea.vmem %s4, %s745
        // Predicated region
        $region49: #{tpu_custom_call.1} parent=35 // pred_check
          %p747 = pneg %p133
        $region50: #{tpu_custom_call.1} parent=35 // pred_check_branch
          %749 = sbr.rel (%p747) target = $region52
        $region51: #{tpu_custom_call.1} parent=35 // pred_region
          %s750 = smul.u32 16, %s21
        $region52: #{tpu_custom_call.1} parent=35 // pred_fallthru
          _
      $region36: #{tpu_custom_call.1} parent=5 // pred_fallthru
        _
      %p751 = scmp.le.s32.totalorder 2, %s16
      // Predicated region
      $region53: #{tpu_custom_call.1} parent=5 // pred_check
        %p752 = pneg %p751
      $region54: #{tpu_custom_call.1} parent=5 // pred_check_branch
        %754 = sbr.rel (%p752) target = $region56
      $region55: #{tpu_custom_call.1} parent=5 // pred_region
        %s755 = ssub.s32 %s16, 2
        // Predicated region
        $region57: #{tpu_custom_call.1} parent=55 // pred_check
          %p756 = pneg %p139
        $region58: #{tpu_custom_call.1} parent=55 // pred_check_branch
          %758 = sbr.rel (%p756) target = $region60
        $region59: #{tpu_custom_call.1} parent=55 // pred_region
          %s759 = smul.u32 16, %s22
          %p760 = scmp.lt.s32.totalorder %s759, 31
          %s761 = scalar_select %p760, %s759, 31
          %s762 = smul.addr %s761, 8
          %s763 = scalar_lea.vmem %s4, %s762
        $region60: #{tpu_custom_call.1} parent=55 // pred_fallthru
          _
      $region56: #{tpu_custom_call.1} parent=5 // pred_fallthru
        _
    $region6: #{tpu_custom_call.1} parent=1 // loop_footer
      %s20 = sadd.s32 1, %s16
    $region7: #{tpu_custom_call.1} parent=1 // loop_footer_branch
      %15 = sbr.rel target = $region3
    $region8: #{tpu_custom_call.1} parent=1 // loop_exit
      _
    %764 = vsyncpa [#allocation3], 1
    %s765 = scalar_lea.sflag [#allocation3], 1
    %766 = vsyncpa %s765, 1
    %767 = vsyncpa [#allocation5], 1
    %s768 = scalar_lea.sflag [#allocation5], 1
    %769 = vsyncpa %s768, 1

</llo_original>
